<compile_context>
chip_gen: v7x
topology: tpu7x:2x2x1
jax: 0.10.0
libtpu: 0.0.40
codegen_flags: <defaults>
</compile_context>

<pallas_src>
import functools

import jax
import jax.numpy as jnp
from jax import lax
from jax.experimental import pallas as pl
from jax.experimental.pallas import tpu as pltpu

_VMEM_LIMIT = 32 * 1024 * 1024  # safe on v5e/v6e (128 MiB) and v7x (64 MiB phys)


# ----------------------------------------------------------------------------
# Kernel 1: row-tiled dense / linear layer (qkv projection, output projection).
# Grid = (cdiv(M, tm),); x is tiled over rows, the (K, N) weight stays resident.
# ----------------------------------------------------------------------------
def _matmul_kernel(x_ref, w_ref, o_ref):
    o_ref[...] = jnp.dot(
        x_ref[...], w_ref[...], preferred_element_type=jnp.float32
    ).astype(o_ref.dtype)


def _matmul_bias_kernel(x_ref, w_ref, b_ref, o_ref):
    y = jnp.dot(x_ref[...], w_ref[...], preferred_element_type=jnp.float32)
    y = y + b_ref[...].astype(jnp.float32)  # (1, N) broadcasts over rows
    o_ref[...] = y.astype(o_ref.dtype)


def pallas_linear(x2d, w, bias=None, *, tm=512):
    """x2d: (M, K), w: (K, N), bias: (N,) or None -> (M, N)."""
    M, K = x2d.shape
    N = w.shape[1]
    tm = min(tm, M)
    grid = (pl.cdiv(M, tm),)

    in_specs = [
        pl.BlockSpec((tm, K), lambda i: (i, 0)),
        pl.BlockSpec((K, N), lambda i: (0, 0)),
    ]
    args = [x2d, w]
    if bias is not None:
        in_specs.append(pl.BlockSpec((1, N), lambda i: (0, 0)))
        args.append(bias.reshape(1, N))
        kernel = _matmul_bias_kernel
    else:
        kernel = _matmul_kernel

    return pl.pallas_call(
        kernel,
        out_shape=jax.ShapeDtypeStruct((M, N), x2d.dtype),
        grid=grid,
        in_specs=in_specs,
        out_specs=pl.BlockSpec((tm, N), lambda i: (i, 0)),
        compiler_params=pltpu.CompilerParams(
            dimension_semantics=("parallel",),
            vmem_limit_bytes=_VMEM_LIMIT,
        ),
    )(*args)


# ----------------------------------------------------------------------------
# Kernel 2: fused multi-head attention.  Grid = (B,); one grid step consumes
# the (N, 3C) qkv slab of one batch item, loops over all heads in-kernel, and
# writes a single lane-dense (N, C) output slab (heads concatenated along C,
# matching (attn @ v).transpose(1, 2).reshape(B, N, C)).
#
# TODO(synk): for long sequences (N >= ~2k) switch to a KV-block loop with
# online softmax (flash pattern) so the (N, N) scores never materialize.
# ----------------------------------------------------------------------------
def _attn_kernel(qkv_ref, o_ref, *, num_heads, head_dim, scale):
    qkv = qkv_ref[0]                      # (N, 3C), input dtype
    C = num_heads * head_dim
    hd = head_dim

    outs = []
    for h in range(num_heads):            # static unrolled loop over heads
        # qkv last-dim layout is [3][H][hd] (matches torch reshape/permute):
        #   q_h -> [h*hd : (h+1)*hd], k_h -> [C + ...], v_h -> [2C + ...]
        q = qkv[:, h * hd:(h + 1) * hd] * scale          # fold scale into q
        k = qkv[:, C + h * hd: C + (h + 1) * hd]
        v = qkv[:, 2 * C + h * hd: 2 * C + (h + 1) * hd]

        # q @ k^T via dot_general contracting last dims; f32 accumulation.
        s = lax.dot_general(
            q, k, (((1,), (1,)), ((), ())),
            preferred_element_type=jnp.float32,          # (N, N) f32 scores
        )
        s = s - jnp.max(s, axis=-1, keepdims=True)       # stable softmax (f32)
        p = jnp.exp(s)
        inv = pl.reciprocal(jnp.sum(p, axis=-1, keepdims=True), approx=True)
        p = (p * inv).astype(v.dtype)                    # back to MXU dtype

        outs.append(
            jnp.dot(p, v, preferred_element_type=jnp.float32)   # (N, hd)
        )

    # Single lane-dense store: (N, C) slab, heads concatenated along channels.
    o_ref[0] = jnp.concatenate(outs, axis=-1).astype(o_ref.dtype)


def pallas_mha(qkv, *, num_heads, scale):
    """qkv: (B, N, 3C) -> attention output in (B, N, C) layout."""
    B, N, C3 = qkv.shape
    C = C3 // 3
    hd = C // num_heads
    kernel = functools.partial(
        _attn_kernel, num_heads=num_heads, head_dim=hd, scale=scale)
    return pl.pallas_call(
        kernel,
        out_shape=jax.ShapeDtypeStruct((B, N, C), qkv.dtype),
        grid=(B,),
        in_specs=[pl.BlockSpec((1, N, C3), lambda b: (b, 0, 0))],
        out_specs=pl.BlockSpec((1, N, C), lambda b: (b, 0, 0)),
        compiler_params=pltpu.CompilerParams(
            dimension_semantics=("parallel",),
            vmem_limit_bytes=_VMEM_LIMIT,
        ),
    )(qkv)


# ----------------------------------------------------------------------------
# Full Attention.forward
# ----------------------------------------------------------------------------
def attention_forward(x, w_qkv, w_proj, b_proj, num_heads):
    B, N, C = x.shape
    hd = C // num_heads
    scale = hd ** (-0.5)  # qk_scale=None -> head_dim ** -0.5

    # qkv projection (qkv_bias=False -> no bias kernel at all).
    qkv = pallas_linear(x.reshape(B * N, C), w_qkv, bias=None)   # (B*N, 3C)
    qkv = qkv.reshape(B, N, 3 * C)                               # free view

    # fused MHA: q/k/v split + softmax(qk^T*scale) @ v + head merge, output
    # already in (B, N, C) layout (no HBM transpose).
    o = pallas_mha(qkv, num_heads=num_heads, scale=scale)        # (B, N, C)

    # output projection (proj_drop = identity).
    y = pallas_linear(o.reshape(B * N, C), w_proj, bias=b_proj)  # (B*N, C)
    return y.reshape(B, N, C)


# ----------------------------------------------------------------------------
# Pure-JAX reference for validation
# ----------------------------------------------------------------------------
def attention_ref(x, w_qkv, w_proj, b_proj, num_heads):
    B, N, C = x.shape
    H = num_heads
    hd = C // H
    scale = hd ** (-0.5)
    qkv = (x.reshape(B * N, C) @ w_qkv).reshape(B, N, 3, H, hd).transpose(2, 0, 3, 1, 4)
    q, k, v = qkv[0], qkv[1], qkv[2]
    attn = jnp.einsum("bhnd,bhmd->bhnm", q, k) * scale
    attn = jax.nn.softmax(attn, axis=-1)
    o = jnp.einsum("bhnm,bhmd->bhnd", attn, v)
    o = o.transpose(0, 2, 1, 3).reshape(B * N, C)
    return (o @ w_proj + b_proj).reshape(B, N, C)


if __name__ == "__main__":
    B, N, C, H = 2, 8, 32, 4   # batch, tokens, dim, num_heads (head_dim = 8)

    key = jax.random.PRNGKey(0)
    k_x, k_qkv, k_proj, k_b = jax.random.split(key, 4)
    x = jax.random.normal(k_x, (B, N, C), jnp.float32)
    w_qkv = jax.random.normal(k_qkv, (C, 3 * C), jnp.float32) * 0.05
    w_proj = jax.random.normal(k_proj, (C, C), jnp.float32) * 0.05
    b_proj = jax.random.normal(k_b, (C,), jnp.float32) * 0.05

    out = attention_forward(x, w_qkv, w_proj, b_proj, H)
    out = jax.block_until_ready(out)

    ref = attention_ref(x, w_qkv, w_proj, b_proj, H)
    assert out.shape == (B, N, C)
    # Tolerance slightly relaxed because the softmax denominator uses the EUP
    # approximate reciprocal (pl.reciprocal(..., approx=True)).
    assert jnp.allclose(out, ref, atol=5e-3, rtol=5e-3), "mismatch vs reference"

    print("KERNEL_OK")
</pallas_src>

<mosaic_0001>
module attributes {stable_mosaic.version = 11 : i64} {
  func.func @_matmul_kernel(%arg0: i32, %arg1: memref<16x32xf32, #tpu.memory_space<vmem>>, %arg2: memref<32x96xf32, #tpu.memory_space<vmem>>, %arg3: memref<16x96xf32, #tpu.memory_space<vmem>>) attributes {dimension_semantics = [#tpu.dimension_semantics<parallel>], iteration_bounds = array<i64: 1>, scalar_prefetch = 0 : i64, scratch_operands = 0 : i64, tpu.core_type = #tpu.core_type<tc>, window_params = [{transform_indices = @transform_0, window_bounds = array<i64: 16, 32>}, {pipeline_mode = #tpu.pipeline_mode<synchronous>, transform_indices = @transform_1, window_bounds = array<i64: 32, 96>}, {transform_indices = @transform_2, window_bounds = array<i64: 16, 96>}]} {
    %c0 = arith.constant 0 : index
    %c0_0 = arith.constant 0 : index
    %0 = vector.load %arg1[%c0, %c0_0] : memref<16x32xf32, #tpu.memory_space<vmem>>, vector<16x32xf32>
    %c0_1 = arith.constant 0 : index
    %c0_2 = arith.constant 0 : index
    %1 = vector.load %arg2[%c0_1, %c0_2] : memref<32x96xf32, #tpu.memory_space<vmem>>, vector<32x96xf32>
    %cst = arith.constant dense<0.000000e+00> : vector<16x96xf32>
    %2 = tpu.matmul %0, %1, %cst {dimension_numbers = #tpu.dot_dimension_numbers<[1], [0], [0], [1], [0, 0, 1, 1], [], []>} : vector<16x32xf32>, vector<32x96xf32>, vector<16x96xf32> -> vector<16x96xf32>
    %c0_3 = arith.constant 0 : index
    %c0_4 = arith.constant 0 : index
    %3 = vector.load %arg3[%c0_3, %c0_4] : memref<16x96xf32, #tpu.memory_space<vmem>>, vector<16x96xf32>
    tpu.vector_store %arg3[%c0_3, %c0_4], %2 {strides = array<i32>} : memref<16x96xf32, #tpu.memory_space<vmem>>, vector<16x96xf32>,
    return
  }
  func.func @transform_0(%arg0: i32) -> (i32, i32) {
    %c0_i32 = arith.constant 0 : i32
    %c0_i32_0 = arith.constant 0 : i32
    return %arg0, %c0_i32 : i32, i32
  }
  func.func @transform_1(%arg0: i32) -> (i32, i32) {
    %c0_i32 = arith.constant 0 : i32
    %c0_i32_0 = arith.constant 0 : i32
    %c0_i32_1 = arith.constant 0 : i32
    return %c0_i32, %c0_i32_0 : i32, i32
  }
  func.func @transform_2(%arg0: i32) -> (i32, i32) {
    %c0_i32 = arith.constant 0 : i32
    %c0_i32_0 = arith.constant 0 : i32
    return %arg0, %c0_i32 : i32, i32
  }
}

</mosaic_0001>

<llo_original>
// kernel: tpu_custom_call.1
$region0: #{tpu_custom_call.1}
  #allocation0 [shape = 'u32[]', space=smem, size = 0x4, offset = 0x4, fixed_abs, tag = 'smem constant byte address 0x4 - core index']
  #allocation1 [shape = 'u32[144,128]{1,0:T(1,128)}', space=vmem, size = 0x12000, scoped, tag = 'internal scratch']
  %s0 = inlined_call_operand.hbm [shape: f32[16,32], index: 0, kind: input, shape index: {}]
  %s1 = inlined_call_operand.hbm [shape: f32[32,96], index: 1, kind: input, shape index: {}]
  %s2 = inlined_call_operand.hbm [shape: f32[16,96], index: 2, kind: output, shape index: {}]
  %s3 = sld [smem:[#allocation0]]
  $region26: #{tpu_custom_call.1} parent=0
    _
  %s5 = ssub.s32 1, %s3
  %s6 = scalar_select 0, %s5, %s3
  $region1: #{tpu_custom_call.1} parent=0
    #allocation2 [shape = 'u8[8192]{0}', space=vmem, size = 0x2000, scoped, tag = 'input window, operand 0, single buffered']
    #allocation3 [shape = 's32[1]{0}', space=sflag, size = 0x4, scoped, tag = 'scoped memory for tpu_custom_call.1']
    #allocation4 [shape = 's32[1]{0}', space=sflag, size = 0x4, scoped, tag = 'scoped memory for tpu_custom_call.1']
    #allocation5 [shape = 'u8[16384]{0}', space=vmem, size = 0x4000, scoped, tag = 'input window, operand 1, single buffered']
    #allocation6 [shape = 's32[1]{0}', space=sflag, size = 0x4, scoped, tag = 'scoped memory for tpu_custom_call.1']
    #allocation7 [shape = 'u8[8192]{0}', space=vmem, size = 0x2000, scoped, tag = 'output window, operand 0, single buffered']
    %7 = vsyncpa [#allocation3], 0
    %8 = vsyncpa [#allocation6], 0
    %9 = vsyncpa [#allocation4], 0
    // Predicated region
    $region2: #{tpu_custom_call.1} parent=1 // pred_check
      _
    $region3: #{tpu_custom_call.1} parent=1 // pred_check_branch
      %11 = sbr.rel (0) target = $region5
    $region4: #{tpu_custom_call.1} parent=1 // pred_region
      %s13 = ssub.s32 256, 256
      %14 = vsyncadd [#allocation3], %s13
      %s15 = sshll.u32 [#allocation2], 4
      %s16 = int_to_ptr.vmem [resolvable:$true] %s15
      %21 = dma.hbm_to_vmem [thread:$0]  %s0, 256, %s16, [#allocation3], 128, 128, 8
    $region5: #{tpu_custom_call.1} parent=1 // pred_fallthru
      _
    // Predicated region
    $region6: #{tpu_custom_call.1} parent=1 // pred_check
      _
    $region7: #{tpu_custom_call.1} parent=1 // pred_check_branch
      %23 = sbr.rel (0) target = $region9
    $region8: #{tpu_custom_call.1} parent=1 // pred_region
      %s25 = ssub.s32 512, 512
      %26 = vsyncadd [#allocation6], %s25
      %s27 = sshll.u32 [#allocation5], 4
      %s28 = int_to_ptr.vmem [resolvable:$true] %s27
      %33 = dma.hbm_to_vmem [thread:$0]  %s1, 512, %s28, [#allocation6], 128, 128, 8
    $region9: #{tpu_custom_call.1} parent=1 // pred_fallthru
      _
    // Predicated region
    $region10: #{tpu_custom_call.1} parent=1 // pred_check
      _
    $region11: #{tpu_custom_call.1} parent=1 // pred_check_branch
      %35 = sbr.rel (0) target = $region13
    $region12: #{tpu_custom_call.1} parent=1 // pred_region
      %36 = dma.done [#allocation3], 256
    $region13: #{tpu_custom_call.1} parent=1 // pred_fallthru
      _
    // Predicated region
    $region14: #{tpu_custom_call.1} parent=1 // pred_check
      _
    $region15: #{tpu_custom_call.1} parent=1 // pred_check_branch
      %38 = sbr.rel (0) target = $region17
    $region16: #{tpu_custom_call.1} parent=1 // pred_region
      %39 = dma.done [#allocation6], 512
    $region17: #{tpu_custom_call.1} parent=1 // pred_fallthru
      _
    %v40 = vld [vmem:[#allocation2] sm:$0xff]
    %v41 = vld [vmem:[#allocation2 + $0x8] sm:$0xff]
    %v42 = vld [vmem:[#allocation5] sm:$0xff]
    %v43 = vld [vmem:[#allocation5 + $0x8] sm:$0xff]
    %v44 = vld [vmem:[#allocation5 + $0x10] sm:$0xff]
    %v45 = vld [vmem:[#allocation5 + $0x18] sm:$0xff]
    %vm46 = vcmask 261120
    %v48 = vsel %vm46, %v40, 0
    %v51 = vsel %vm46, %v41, 0
    %53 = vmatprep.subr.mxu0 0.0
    %54 = vmatpush1.msra.mxu0 %v42
    %55 = vmatprep.subr.mxu0 0.0
    %56 = vmatpush1.msra.mxu0 %v43
    %57 = vmatprep.subr.mxu0 0.0
    %58 = vmatpush1.msra.mxu0 %v44
    %59 = vmatprep.subr.mxu0 0.0
    %60 = vmatpush1.msra.mxu0 %v45
    %61 = vmatprep.subr.mxu0 0.0
    %62 = vmatpush1.msra.mxu0 0.0
    %63 = vmatprep.subr.mxu0 0.0
    %64 = vmatpush1.msra.mxu0 0.0
    %65 = vmatprep.subr.mxu0 0.0
    %66 = vmatpush1.msra.mxu0 0.0
    %67 = vmatprep.subr.mxu0 0.0
    %68 = vmatpush1.msra.mxu0 0.0
    %69 = vmatprep.subr.mxu0 0.0
    %70 = vmatpush1.msra.mxu0 0.0
    %71 = vmatprep.subr.mxu0 0.0
    %72 = vmatpush1.msra.mxu0 0.0
    %73 = vmatprep.subr.mxu0 0.0
    %74 = vmatpush1.msra.mxu0 0.0
    %75 = vmatprep.subr.mxu0 0.0
    %76 = vmatpush1.msra.mxu0 0.0
    %77 = vmatprep.subr.mxu0 0.0
    %78 = vmatpush1.msra.mxu0 0.0
    %79 = vmatprep.subr.mxu0 0.0
    %80 = vmatpush1.msra.mxu0 0.0
    %81 = vmatprep.subr.mxu0 0.0
    %82 = vmatpush1.msra.mxu0 0.0
    %83 = vmatprep.subr.mxu0 0.0
    %84 = vmatpush1.msra.mxu0 0.0
    %85 = vmatprep.subr.mxu0 0.0
    %86 = vmatpush1.msra.mxu0 0.0
    %87 = vmatprep.subr.mxu0 0.0
    %88 = vmatpush1.msra.mxu0 0.0
    %89 = vmatprep.subr.mxu0 0.0
    %90 = vmatpush1.msra.mxu0 0.0
    %91 = vmatprep.subr.mxu0 0.0
    %92 = vmatpush1.msra.mxu0 0.0
    %93 = vmatprep.subr.mxu0 0.0
    %94 = vmatpush1.msra.mxu0 0.0
    %95 = vmatprep.subr.mxu0 0.0
    %96 = vmatpush1.msra.mxu0 0.0
    %97 = vmatprep.subr.mxu0 0.0
    %98 = vmatpush1.msra.mxu0 0.0
    %99 = vmatprep.subr.mxu0 0.0
    %100 = vmatpush1.msra.mxu0 0.0
    %101 = vmatprep.subr.mxu0 0.0
    %102 = vmatpush1.msra.mxu0 0.0
    %103 = vmatprep.subr.mxu0 0.0
    %104 = vmatpush1.msra.mxu0 0.0
    %105 = vmatprep.subr.mxu0 0.0
    %106 = vmatpush1.msra.mxu0 0.0
    %107 = vmatprep.subr.mxu0 0.0
    %108 = vmatpush1.msra.mxu0 0.0
    %109 = vmatprep.subr.mxu0 0.0
    %110 = vmatpush1.msra.mxu0 0.0
    %111 = vmatprep.subr.mxu0 0.0
    %112 = vmatpush1.msra.mxu0 0.0
    %113 = vmatprep.subr.mxu0 0.0
    %114 = vmatpush1.msra.mxu0 0.0
    %115 = vmatprep.subr.mxu0 0.0
    %116 = vmatpush1.msra.mxu0 0.0
    %117 = vmatprep.mubr.f32.mxu0 0.0
    %118 = vmatmul.mubr.f32.gmra.mrb[0].mxu0 %v48
    %v119 = vpop.f32.mrb[0].mxu0
    %v120 = vadd.f32 0.0, %v119
    %v121 = vpop.f32.mrb[0].mxu0
    %122 = vmatprep.mubr.f32.mxu0 0.0
    %123 = vmatmul.mubr.f32.gmra.mrb[0].mxu0 %v51
    %v124 = vpop.f32.mrb[0].mxu0
    %v125 = vadd.f32 0.0, %v124
    %v126 = vpop.f32.mrb[0].mxu0
    %127 = vdwg.mxu0
    %vm128 = vcmask 785408
    %129 = vst.msk [vmem:[#allocation7] sm:$0xff] %vm128, %v120
    %130 = vst.msk [vmem:[#allocation7 + $0x8] sm:$0xff] %vm128, %v125
    // Predicated region
    $region18: #{tpu_custom_call.1} parent=1 // pred_check
      _
    $region19: #{tpu_custom_call.1} parent=1 // pred_check_branch
      %132 = sbr.rel (0) target = $region21
    $region20: #{tpu_custom_call.1} parent=1 // pred_region
      %s134 = ssub.s32 256, 256
      %135 = vsyncadd [#allocation4], %s134
      %s136 = sshll.u32 [#allocation7], 4
      %s137 = int_to_ptr.vmem [resolvable:$true] %s136
      %142 = dma.vmem_to_hbm [thread:$0]  %s137, 256, %s2, [#allocation4], 128, 128, 8
    $region21: #{tpu_custom_call.1} parent=1 // pred_fallthru
      _
    // Predicated region
    $region22: #{tpu_custom_call.1} parent=1 // pred_check
      _
    $region23: #{tpu_custom_call.1} parent=1 // pred_check_branch
      %144 = sbr.rel (0) target = $region25
    $region24: #{tpu_custom_call.1} parent=1 // pred_region
      %145 = dma.done [#allocation4], 256
    $region25: #{tpu_custom_call.1} parent=1 // pred_fallthru
      _
    %146 = vsyncpa [#allocation3], 1
    %147 = vsyncpa [#allocation6], 1
    %148 = vsyncpa [#allocation4], 1

</llo_original>
